<compile_context>
chip_gen: v5e
topology: v5e:2x2
jax: 0.10.0
libtpu: 0.0.40
codegen_flags: <defaults>
</compile_context>

<pallas_src>
import functools

import jax
import jax.numpy as jnp
from jax.experimental import pallas as pl
from jax.experimental.pallas import tpu as pltpu


def _linreg_kernel(x_ref, w_ref, b_ref, o_ref):
    # x_ref / o_ref: (block_rows, lanes) lane-dense tiles in VMEM.
    # w_ref / b_ref: (1, 1) f32 scalars in SMEM.
    x = x_ref[...].astype(jnp.float32)
    o_ref[...] = (x * w_ref[0, 0] + b_ref[0, 0]).astype(o_ref.dtype)


def _round_up(x: int, m: int) -> int:
    return ((x + m - 1) // m) * m


@functools.partial(jax.jit, static_argnames=("lanes", "tile_rows"))
def simple_linear_regression(x, weight, bias, *, lanes=512, tile_rows=2048):
    """Forward of nn.Linear(1, 1): y = x * weight + bias.

    x:      (..., 1) float array (typically (N, 1))
    weight: (1, 1)
    bias:   (1,)
    returns array of x's shape, in x's dtype (f32 for non-f32/bf16 inputs).
    """
    # Stream f32 / bf16 natively; everything else is upcast to f32.
    dtype = x.dtype if x.dtype in (jnp.float32, jnp.bfloat16) else jnp.float32
    sub = 8 if dtype == jnp.float32 else 16  # sublane granularity for this dtype

    w2 = jnp.asarray(weight, jnp.float32).reshape(1, 1)
    b2 = jnp.asarray(bias, jnp.float32).reshape(1, 1)

    flat = x.reshape(-1).astype(dtype)
    total = flat.shape[0]

    # Validate / round user tile parameters to the (sub, 128) layout constraint.
    lanes = max(128, _round_up(int(lanes), 128))
    tile_rows = max(sub, _round_up(int(tile_rows), sub))
    if total < lanes:
        lanes = 128

    # Minimal padding: one sublane group (sub * lanes elements), not a full tile.
    padded_total = _round_up(total, sub * lanes)
    rows = padded_total // lanes
    padded = padded_total != total
    if padded:
        flat = jnp.pad(flat, (0, padded_total - total))
    x2 = flat.reshape(rows, lanes)

    # Tiling: single block for small inputs (zero per-step pipeline overhead);
    # otherwise ~4 MiB row tiles, capped so mid-sized inputs get >= ~4 grid steps.
    if rows <= tile_rows:
        block_rows = rows
        grid = (1,)
    else:
        block_rows = min(tile_rows, max(256, _round_up(pl.cdiv(rows, 4), sub)))
        # Last block may be ragged; Pallas drops the out-of-bounds writes.
        grid = (pl.cdiv(rows, block_rows),)

    extra = {}
    if padded:
        # The padded slab is wrapper-internal -> let the output reuse its HBM buffer.
        extra["input_output_aliases"] = {0: 0}

    out2 = pl.pallas_call(
        _linreg_kernel,
        out_shape=jax.ShapeDtypeStruct((rows, lanes), dtype),
        grid_spec=pltpu.PrefetchScalarGridSpec(
            num_scalar_prefetch=0,
            grid=grid,
            in_specs=[
                pl.BlockSpec((block_rows, lanes), lambda i: (i, 0)),
                pl.BlockSpec(memory_space=pltpu.SMEM),
                pl.BlockSpec(memory_space=pltpu.SMEM),
            ],
            out_specs=pl.BlockSpec((block_rows, lanes), lambda i: (i, 0)),
        ),
        compiler_params=pltpu.CompilerParams(
            dimension_semantics=("parallel",),
            vmem_limit_bytes=48 * 1024 * 1024,
        ),
        **extra,
    )(x2, w2, b2)

    out_flat = out2.reshape(-1)
    if padded:
        out_flat = out_flat[:total]
    return out_flat.reshape(x.shape)


if __name__ == "__main__":
    key = jax.random.PRNGKey(0)
    kx, kw, kb, kx2, kx3 = jax.random.split(key, 5)

    # nn.Linear(1, 1) default init: U(-1, 1) for fan_in = 1.
    weight = jax.random.uniform(kw, (1, 1), jnp.float32, minval=-1.0, maxval=1.0)
    bias = jax.random.uniform(kb, (1,), jnp.float32, minval=-1.0, maxval=1.0)

    # Case 1: small batch (8 scalar samples) -> single-block path with padding.
    x_small = jax.random.normal(kx, (8, 1), jnp.float32)
    y_small = jax.block_until_ready(simple_linear_regression(x_small, weight, bias))
    assert y_small.shape == (8, 1)
    assert jnp.allclose(y_small, x_small @ weight.T + bias, atol=1e-6)

    # Case 2: already-aligned batch (4096 = 8 * 512) -> no pad / no slice path.
    x_mid = jax.random.normal(kx2, (4096, 1), jnp.float32)
    y_mid = jax.block_until_ready(simple_linear_regression(x_mid, weight, bias))
    assert y_mid.shape == (4096, 1)
    assert jnp.allclose(y_mid, x_mid @ weight.T + bias, atol=1e-6)

    # Case 3: ragged batch with small tiles -> multi-step grid whose last block
    # is ragged (OOB writes dropped) + minimal padding + output aliasing.
    x_big = jax.random.normal(kx3, (2053, 1), jnp.float32)
    y_big = jax.block_until_ready(
        simple_linear_regression(x_big, weight, bias, lanes=128, tile_rows=16)
    )
    assert y_big.shape == (2053, 1)
    assert jnp.allclose(y_big, x_big @ weight.T + bias, atol=1e-6)

    print("KERNEL_OK")
</pallas_src>

<mosaic_0001>
module attributes {stable_mosaic.version = 11 : i64} {
  func.func @_linreg_kernel(%arg0: i32, %arg1: memref<8x128xf32, #tpu.memory_space<vmem>>, %arg2: memref<1x1xf32, #tpu.memory_space<smem>>, %arg3: memref<1x1xf32, #tpu.memory_space<smem>>, %arg4: memref<8x128xf32, #tpu.memory_space<vmem>>) attributes {dimension_semantics = [#tpu.dimension_semantics<parallel>], iteration_bounds = array<i64: 1>, scalar_prefetch = 0 : i64, scratch_operands = 0 : i64, tpu.core_type = #tpu.core_type<tc>, window_params = [{transform_indices = @transform_0, window_bounds = array<i64: 8, 128>}, {transform_indices = @transform_1, window_bounds = array<i64: 1, 1>}, {transform_indices = @transform_2, window_bounds = array<i64: 1, 1>}, {transform_indices = @transform_3, window_bounds = array<i64: 8, 128>}]} {
    %c0 = arith.constant 0 : index
    %c0_0 = arith.constant 0 : index
    %0 = vector.load %arg1[%c0, %c0_0] : memref<8x128xf32, #tpu.memory_space<vmem>>, vector<8x128xf32>
    %c0_1 = arith.constant 0 : index
    %c0_2 = arith.constant 0 : index
    %1 = memref.load %arg2[%c0_1, %c0_2] : memref<1x1xf32, #tpu.memory_space<smem>>
    %2 = vector.broadcast %1 : f32 to vector<8x128xf32>
    %3 = arith.mulf %0, %2 : vector<8x128xf32>
    %c0_3 = arith.constant 0 : index
    %c0_4 = arith.constant 0 : index
    %4 = memref.load %arg3[%c0_3, %c0_4] : memref<1x1xf32, #tpu.memory_space<smem>>
    %5 = vector.broadcast %4 : f32 to vector<8x128xf32>
    %6 = arith.addf %3, %5 : vector<8x128xf32>
    %c0_5 = arith.constant 0 : index
    %c0_6 = arith.constant 0 : index
    %7 = vector.load %arg4[%c0_5, %c0_6] : memref<8x128xf32, #tpu.memory_space<vmem>>, vector<8x128xf32>
    tpu.vector_store %arg4[%c0_5, %c0_6], %6 {strides = array<i32>} : memref<8x128xf32, #tpu.memory_space<vmem>>, vector<8x128xf32>,
    return
  }
  func.func @transform_0(%arg0: i32) -> (i32, i32) {
    %c0_i32 = arith.constant 0 : i32
    %c0_i32_0 = arith.constant 0 : i32
    return %arg0, %c0_i32 : i32, i32
  }
  func.func @transform_1(%arg0: i32) -> (i32, i32) {
    %c0_i32 = arith.constant 0 : i32
    %c0_i32_0 = arith.constant 0 : i32
    %c0_i32_1 = arith.constant 0 : i32
    return %c0_i32, %c0_i32_0 : i32, i32
  }
  func.func @transform_2(%arg0: i32) -> (i32, i32) {
    %c0_i32 = arith.constant 0 : i32
    %c0_i32_0 = arith.constant 0 : i32
    %c0_i32_1 = arith.constant 0 : i32
    return %c0_i32, %c0_i32_0 : i32, i32
  }
  func.func @transform_3(%arg0: i32) -> (i32, i32) {
    %c0_i32 = arith.constant 0 : i32
    %c0_i32_0 = arith.constant 0 : i32
    return %arg0, %c0_i32 : i32, i32
  }
}

</mosaic_0001>

<llo_original>
// kernel: simple_linear_regression.1
$region0: #{simple_linear_regression.1}
  #allocation0 [shape = 'u32[]', space=smem, size = 0x4, offset = 0x4, fixed_abs, tag = 'smem constant byte address 0x4 - core index']
  #allocation1 [shape = 'u32[72,128]{1,0:T(1,128)}', space=vmem, size = 0x9000, scoped, tag = 'internal scratch']
  #allocation2 [shape = 'f32[1,1]{1,0:T(1,128)S(6)}', space=smem, size = 0x200, scoped, tag = 'scoped memory for simple_linear_regression.1']
  #allocation3 [shape = 'f32[1,1]{1,0:T(1,128)S(6)}', space=smem, size = 0x200, scoped, tag = 'scoped memory for simple_linear_regression.1']
  %s0 = inlined_call_operand.vmem [shape: f32[8,128], index: 0, kind: input, shape index: {}, may-alias: {0,3}]
  %s1 = inlined_call_operand.<no memory space> [shape: f32[1,1], index: 1, kind: input, shape index: {}]
  %s2 = inlined_call_operand.<no memory space> [shape: f32[1,1], index: 2, kind: input, shape index: {}]
  %s3 = inlined_call_operand.vmem [shape: f32[8,128], index: 3, kind: output, shape index: {}, may-alias: {0,3}]
  %s4 = sld [smem:[#allocation0]]
  $region22: #{simple_linear_regression.1} parent=0
    _
  %s6 = ssub.s32 1, %s4
  %s7 = scalar_select 0, %s6, %s4
  %8 = sst [smem:[#allocation2]] %s1
  %9 = sst [smem:[#allocation3]] %s2
  // Predicated region
  $region2: #{simple_linear_regression.1} parent=0 // pred_check
    _
  $region3: #{simple_linear_regression.1} parent=0 // pred_check_branch
    %11 = sbr.rel (0) target = $region5
  $region4: #{simple_linear_regression.1} parent=0 // pred_region
    _
  $region5: #{simple_linear_regression.1} parent=0 // pred_fallthru
    _
  // Predicated region
  $region6: #{simple_linear_regression.1} parent=0 // pred_check
    _
  $region7: #{simple_linear_regression.1} parent=0 // pred_check_branch
    %13 = sbr.rel (0) target = $region9
  $region8: #{simple_linear_regression.1} parent=0 // pred_region
    _
  $region9: #{simple_linear_regression.1} parent=0 // pred_fallthru
    _
  // Predicated region
  $region10: #{simple_linear_regression.1} parent=0 // pred_check
    _
  $region11: #{simple_linear_regression.1} parent=0 // pred_check_branch
    %15 = sbr.rel (0) target = $region13
  $region12: #{simple_linear_regression.1} parent=0 // pred_region
    _
  $region13: #{simple_linear_regression.1} parent=0 // pred_fallthru
    _
  %v16 = vld [vmem:[%s0] sm:$0xff]
  %s17 = sld [smem:[#allocation2]]
  %v18 = vstv %s17
  %v19 = vmul.f32 %v16, %v18
  %s20 = sld [smem:[#allocation3]]
  %v21 = vstv %s20
  %v22 = vadd.f32 %v19, %v21
  %23 = vst [vmem:[%s3] sm:$0xff] %v22
  // Predicated region
  $region14: #{simple_linear_regression.1} parent=0 // pred_check
    _
  $region15: #{simple_linear_regression.1} parent=0 // pred_check_branch
    %25 = sbr.rel (0) target = $region17
  $region16: #{simple_linear_regression.1} parent=0 // pred_region
    _
  $region17: #{simple_linear_regression.1} parent=0 // pred_fallthru
    _
  // Predicated region
  $region18: #{simple_linear_regression.1} parent=0 // pred_check
    _
  $region19: #{simple_linear_regression.1} parent=0 // pred_check_branch
    %27 = sbr.rel (0) target = $region21
  $region20: #{simple_linear_regression.1} parent=0 // pred_region
    _
  $region21: #{simple_linear_regression.1} parent=0 // pred_fallthru
    _

</llo_original>
